<compile_context>
chip_gen: v7x
topology: tpu7x:2x2x1
jax: 0.10.0
libtpu: 0.0.40
codegen_flags: <defaults>
</compile_context>

<pallas_src>
import functools
import math

import jax
import jax.numpy as jnp
from jax import lax
from jax.experimental import pallas as pl
from jax.experimental.pallas import tpu as pltpu


def _argmax_slot_kernel(q_ref, k_ref, wq_t_ref, bq_ref, wk_t_ref, bk_ref, idx_ref, *, b, m):
    # q_ref: (B, SQ, H)   k_ref: (B*M, SK, H)   wq_t/wk_t: (H, H) pre-transposed
    # bq_ref: (1, H) pre-scaled by SQ   bk_ref: (1, H)   idx_ref: (B, 1) int32
    #
    # Reductions commute with the projections:
    #   sum_q(w_q(query)) = (sum_q query) @ Wq^T + SQ*bq   (SQ*bq folded in wrapper)
    #   mean_k(w_k(key))  = (mean_k key)  @ Wk^T + bk
    qs = jnp.sum(q_ref[...], axis=1)                                   # (B, H)    VPU
    km = jnp.mean(k_ref[...], axis=1)                                  # (B*M, H)  VPU

    Qs = jnp.dot(qs, wq_t_ref[...],
                 preferred_element_type=jnp.float32) + bq_ref[...]     # (B, H)    MXU
    Km = jnp.dot(km, wk_t_ref[...],
                 preferred_element_type=jnp.float32) + bk_ref[...]     # (B*M, H)  MXU

    # attention[b, m] ∝ <Qs_b, Km_{b*M+m}>; compute one (B, B*M) score tile and keep only
    # the block-diagonal (own-batch) columns.
    scores = lax.dot_general(Qs, Km, (((1,), (1,)), ((), ())),
                             preferred_element_type=jnp.float32)       # (B, B*M)

    row = lax.broadcasted_iota(jnp.int32, (b, b * m), 0)
    col = lax.broadcasted_iota(jnp.int32, (b, b * m), 1)
    in_block = (col >= row * m) & (col < (row + 1) * m)
    masked = jnp.where(in_block, scores, -jnp.inf)
    row_max = jnp.max(masked, axis=1, keepdims=True)                   # (B, 1)

    # torch.max tie-break: first index achieving the maximum within the block.
    cand = jnp.where(in_block & (masked == row_max), col - row * m, m)
    idx_ref[...] = jnp.min(cand, axis=1, keepdims=True)                # (B, 1) int32


def self_attention_forward(query, key, params):
    """query: (B, SQ, H), key: (MSZ, SK, H) with MSZ = B*M. Returns (B, SK, H)."""
    B, SQ, H = query.shape
    MSZ, SK, Hk = key.shape
    assert Hk == H and MSZ % B == 0
    M = MSZ // B

    wq, bq = params["w_q"]
    wk, bk = params["w_k"]
    # Pre-transpose weights (free, host/XLA-side) so the kernel feeds the MXU its natural
    # layout; pre-fold the sum-over-SQ into the query bias.
    wq_t = wq.T
    wk_t = wk.T
    bq_s = (float(SQ) * bq).reshape(1, H)
    bk_r = bk.reshape(1, H)

    kernel = functools.partial(_argmax_slot_kernel, b=B, m=M)
    idx2 = pl.pallas_call(
        kernel,
        out_shape=jax.ShapeDtypeStruct((B, 1), jnp.int32),
        in_specs=[pl.BlockSpec(memory_space=pltpu.MemorySpace.VMEM)] * 6,
        out_specs=pl.BlockSpec(memory_space=pltpu.MemorySpace.VMEM),
    )(query, key, wq_t, bq_s, wk_t, bk_r)
    idx = idx2[:, 0]                                                   # (B,) int32

    # Gather the selected *un-projected* key slot per batch element — plain XLA gather
    # (no masked lane-width-32 stores inside the kernel, output DMA is B ints).
    key_r = key.reshape(B, M, SK, H)
    return key_r[jnp.arange(B), idx]


def init_params(rng, hid_dim):
    """Deterministic PyTorch-Linear-style init for all __init__ parameters.
    Only w_q / w_k are used by forward (w_v, trans_k_to_v, fc, dropout are dead)."""
    names = ["w_q", "w_k", "w_v", "trans_k_to_v", "fc"]
    bound = 1.0 / math.sqrt(hid_dim)
    keys = jax.random.split(rng, 2 * len(names))
    params = {}
    for i, name in enumerate(names):
        w = jax.random.uniform(keys[2 * i], (hid_dim, hid_dim), jnp.float32, -bound, bound)
        b = jax.random.uniform(keys[2 * i + 1], (hid_dim,), jnp.float32, -bound, bound)
        params[name] = (w, b)
    return params


if __name__ == "__main__":
    HID, N_HEADS, DROPOUT = 32, 4, 0.1
    B, SQ, M, SK = 2, 8, 4, 8
    MSZ = B * M

    root = jax.random.PRNGKey(0)
    k_param, k_q, k_k = jax.random.split(root, 3)
    params = init_params(k_param, HID)
    query = jax.random.normal(k_q, (B, SQ, HID), jnp.float32)
    key = jax.random.normal(k_k, (MSZ, SK, HID), jnp.float32)

    out = self_attention_forward(query, key, params)
    out = jax.block_until_ready(out)

    # pure-JAX reference of the mask=None forward path (torch-style reduction order)
    wq, bq = params["w_q"]
    wk, bk = params["w_k"]
    Q = query @ wq.T + bq
    K = (key @ wk.T + bk).reshape(B, M, SK, HID)
    key_r = key.reshape(B, M, SK, HID)
    energy = jnp.einsum("bqh,bmkh->bmqk", Q, K) / math.sqrt(HID)
    total = jnp.sum(energy, axis=-2)
    attention = jnp.mean(total, axis=-1)
    idx_ref = jnp.argmax(attention, axis=-1)
    ref = key_r[jnp.arange(B), idx_ref]

    assert out.shape == (B, SK, HID)
    assert jnp.allclose(out, ref, atol=1e-5, rtol=1e-5), "mismatch vs reference"
    print("KERNEL_OK")
</pallas_src>

<mosaic_0001>
module attributes {stable_mosaic.version = 11 : i64} {
  func.func @_argmax_slot_kernel(%arg0: memref<2x8x32xf32, #tpu.memory_space<vmem>>, %arg1: memref<8x8x32xf32, #tpu.memory_space<vmem>>, %arg2: memref<32x32xf32, #tpu.memory_space<vmem>>, %arg3: memref<1x32xf32, #tpu.memory_space<vmem>>, %arg4: memref<32x32xf32, #tpu.memory_space<vmem>>, %arg5: memref<1x32xf32, #tpu.memory_space<vmem>>, %arg6: memref<2x1xi32, #tpu.memory_space<vmem>>) attributes {dimension_semantics = [], scalar_prefetch = 0 : i64, scratch_operands = 0 : i64, tpu.core_type = #tpu.core_type<tc>} {
    %c0 = arith.constant 0 : index
    %c0_0 = arith.constant 0 : index
    %c0_1 = arith.constant 0 : index
    %0 = vector.load %arg0[%c0, %c0_0, %c0_1] : memref<2x8x32xf32, #tpu.memory_space<vmem>>, vector<2x8x32xf32>
    %cst = arith.constant dense<0.000000e+00> : vector<2x32xf32>
    %1 = vector.multi_reduction <add>, %0, %cst [1] : vector<2x8x32xf32> to vector<2x32xf32>
    %c0_2 = arith.constant 0 : index
    %c0_3 = arith.constant 0 : index
    %c0_4 = arith.constant 0 : index
    %2 = vector.load %arg1[%c0_2, %c0_3, %c0_4] : memref<8x8x32xf32, #tpu.memory_space<vmem>>, vector<8x8x32xf32>
    %cst_5 = arith.constant dense<0.000000e+00> : vector<8x32xf32>
    %3 = vector.multi_reduction <add>, %2, %cst_5 [1] : vector<8x8x32xf32> to vector<8x32xf32>
    %cst_6 = arith.constant 8.000000e+00 : f32
    %4 = vector.broadcast %cst_6 : f32 to vector<8x32xf32>
    %5 = arith.divf %3, %4 : vector<8x32xf32>
    %c0_7 = arith.constant 0 : index
    %c0_8 = arith.constant 0 : index
    %6 = vector.load %arg2[%c0_7, %c0_8] : memref<32x32xf32, #tpu.memory_space<vmem>>, vector<32x32xf32>
    %cst_9 = arith.constant dense<0.000000e+00> : vector<2x32xf32>
    %7 = tpu.matmul %1, %6, %cst_9 {dimension_numbers = #tpu.dot_dimension_numbers<[1], [0], [0], [1], [0, 0, 1, 1], [], []>} : vector<2x32xf32>, vector<32x32xf32>, vector<2x32xf32> -> vector<2x32xf32>
    %c0_10 = arith.constant 0 : index
    %c0_11 = arith.constant 0 : index
    %8 = vector.load %arg3[%c0_10, %c0_11] : memref<1x32xf32, #tpu.memory_space<vmem>>, vector<1x32xf32>
    %9 = vector.broadcast %8 : vector<1x32xf32> to vector<2x32xf32>
    %10 = arith.addf %7, %9 : vector<2x32xf32>
    %c0_12 = arith.constant 0 : index
    %c0_13 = arith.constant 0 : index
    %11 = vector.load %arg4[%c0_12, %c0_13] : memref<32x32xf32, #tpu.memory_space<vmem>>, vector<32x32xf32>
    %cst_14 = arith.constant dense<0.000000e+00> : vector<8x32xf32>
    %12 = tpu.matmul %5, %11, %cst_14 {dimension_numbers = #tpu.dot_dimension_numbers<[1], [0], [0], [1], [0, 0, 1, 1], [], []>} : vector<8x32xf32>, vector<32x32xf32>, vector<8x32xf32> -> vector<8x32xf32>
    %c0_15 = arith.constant 0 : index
    %c0_16 = arith.constant 0 : index
    %13 = vector.load %arg5[%c0_15, %c0_16] : memref<1x32xf32, #tpu.memory_space<vmem>>, vector<1x32xf32>
    %14 = vector.broadcast %13 : vector<1x32xf32> to vector<8x32xf32>
    %15 = arith.addf %12, %14 : vector<8x32xf32>
    %cst_17 = arith.constant dense<0.000000e+00> : vector<2x8xf32>
    %16 = tpu.matmul %10, %15, %cst_17 {dimension_numbers = #tpu.dot_dimension_numbers<[1], [1], [0], [0], [0, 0, 1, 0], [], []>} : vector<2x32xf32>, vector<8x32xf32>, vector<2x8xf32> -> vector<2x8xf32>
    %17 = tpu.iota {dimensions = array<i32: 0>} : vector<2x8xi32>
    %18 = tpu.iota {dimensions = array<i32: 1>} : vector<2x8xi32>
    %c4_i32 = arith.constant 4 : i32
    %19 = vector.broadcast %c4_i32 : i32 to vector<2x8xi32>
    %20 = arith.muli %17, %19 : vector<2x8xi32>
    %21 = arith.cmpi sge, %18, %20 : vector<2x8xi32>
    %c1_i32 = arith.constant 1 : i32
    %22 = vector.broadcast %c1_i32 : i32 to vector<2x8xi32>
    %23 = arith.addi %17, %22 : vector<2x8xi32>
    %c4_i32_18 = arith.constant 4 : i32
    %24 = vector.broadcast %c4_i32_18 : i32 to vector<2x8xi32>
    %25 = arith.muli %23, %24 : vector<2x8xi32>
    %26 = arith.cmpi slt, %18, %25 : vector<2x8xi32>
    %27 = arith.andi %21, %26 : vector<2x8xi1>
    %cst_19 = arith.constant 0xFF800000 : f32
    %28 = vector.broadcast %cst_19 : f32 to vector<2x8xf32>
    %29 = arith.select %27, %16, %28 : vector<2x8xi1>, vector<2x8xf32>
    %cst_20 = arith.constant dense<0xFF800000> : vector<2xf32>
    %30 = vector.multi_reduction <maximumf>, %29, %cst_20 [1] : vector<2x8xf32> to vector<2xf32>
    %31 = vector.shape_cast %30 : vector<2xf32> to vector<2x1xf32>
    %32 = vector.broadcast %31 : vector<2x1xf32> to vector<2x8xf32>
    %33 = arith.cmpf oeq, %29, %32 : vector<2x8xf32>
    %34 = arith.andi %27, %33 : vector<2x8xi1>
    %c4_i32_21 = arith.constant 4 : i32
    %35 = vector.broadcast %c4_i32_21 : i32 to vector<2x8xi32>
    %36 = arith.muli %17, %35 : vector<2x8xi32>
    %37 = arith.subi %18, %36 : vector<2x8xi32>
    %c4_i32_22 = arith.constant 4 : i32
    %38 = vector.broadcast %c4_i32_22 : i32 to vector<2x8xi32>
    %39 = arith.select %34, %37, %38 : vector<2x8xi1>, vector<2x8xi32>
    %cst_23 = arith.constant dense<2147483647> : vector<2xi32>
    %40 = vector.multi_reduction <minsi>, %39, %cst_23 [1] : vector<2x8xi32> to vector<2xi32>
    %41 = vector.shape_cast %40 : vector<2xi32> to vector<2x1xi32>
    %c0_24 = arith.constant 0 : index
    %c0_25 = arith.constant 0 : index
    %42 = vector.load %arg6[%c0_24, %c0_25] : memref<2x1xi32, #tpu.memory_space<vmem>>, vector<2x1xi32>
    tpu.vector_store %arg6[%c0_24, %c0_25], %41 {strides = array<i32>} : memref<2x1xi32, #tpu.memory_space<vmem>>, vector<2x1xi32>,
    return
  }
}

</mosaic_0001>

<llo_original>
// kernel: tpu_custom_call.1
$region0: #{tpu_custom_call.1}
  #allocation0 [shape = 'u32[]', space=smem, size = 0x4, offset = 0x4, fixed_abs, tag = 'smem constant byte address 0x4 - core index']
  #allocation1 [shape = 'u32[144,128]{1,0:T(1,128)}', space=vmem, size = 0x12000, scoped, tag = 'internal scratch']
  %s0 = inlined_call_operand.hbm [shape: f32[2,8,32], index: 0, kind: input, shape index: {}]
  %s1 = inlined_call_operand.hbm [shape: f32[8,8,32], index: 1, kind: input, shape index: {}]
  %s2 = inlined_call_operand.hbm [shape: f32[32,32], index: 2, kind: input, shape index: {}]
  %s3 = inlined_call_operand.vmem [shape: f32[1,32], index: 3, kind: input, shape index: {}]
  %s4 = inlined_call_operand.hbm [shape: f32[32,32], index: 4, kind: input, shape index: {}]
  %s5 = inlined_call_operand.vmem [shape: f32[1,32], index: 5, kind: input, shape index: {}]
  %s6 = inlined_call_operand.vmem [shape: s32[2,1], index: 6, kind: output, shape index: {}]
  %s7 = sld [smem:[#allocation0]]
  $region50: #{tpu_custom_call.1} parent=0
    _
  %s9 = ssub.s32 1, %s7
  %s10 = scalar_select 0, %s9, %s7
  $region1: #{tpu_custom_call.1} parent=0
    #allocation2 [shape = 'u8[8192]{0}', space=vmem, size = 0x2000, scoped, tag = 'input window, operand 0, single buffered']
    #allocation3 [shape = 's32[1]{0}', space=sflag, size = 0x4, scoped, tag = 'scoped memory for tpu_custom_call.1']
    #allocation4 [shape = 'u8[32768]{0}', space=vmem, size = 0x8000, scoped, tag = 'input window, operand 1, single buffered']
    #allocation5 [shape = 's32[1]{0}', space=sflag, size = 0x4, scoped, tag = 'scoped memory for tpu_custom_call.1']
    #allocation6 [shape = 'u8[16384]{0}', space=vmem, size = 0x4000, scoped, tag = 'input window, operand 2, single buffered']
    #allocation7 [shape = 'u8[16384]{0}', space=vmem, size = 0x4000, scoped, tag = 'input window, operand 4, single buffered']
    #allocation8 [shape = 's32[1]{0}', space=sflag, size = 0x4, scoped, tag = 'scoped memory for tpu_custom_call.1']
    %11 = vsyncpa [#allocation3], 0
    %12 = vsyncpa [#allocation5], 0
    %13 = vsyncpa [#allocation8], 0
    // Predicated region
    $region2: #{tpu_custom_call.1} parent=1 // pred_check
      _
    $region3: #{tpu_custom_call.1} parent=1 // pred_check_branch
      %15 = sbr.rel (0) target = $region5
    $region4: #{tpu_custom_call.1} parent=1 // pred_region
      %s17 = ssub.s32 256, 256
      %18 = vsyncadd [#allocation3], %s17
      %s19 = sshll.u32 [#allocation2], 4
      %s20 = int_to_ptr.vmem [resolvable:$true] %s19
      %25 = dma.hbm_to_vmem [thread:$0]  %s0, 256, %s20, [#allocation3], 128, 128, 8
    $region5: #{tpu_custom_call.1} parent=1 // pred_fallthru
      _
    // Predicated region
    $region6: #{tpu_custom_call.1} parent=1 // pred_check
      _
    $region7: #{tpu_custom_call.1} parent=1 // pred_check_branch
      %27 = sbr.rel (0) target = $region9
    $region8: #{tpu_custom_call.1} parent=1 // pred_region
      %s29 = ssub.s32 1024, 1024
      %30 = vsyncadd [#allocation5], %s29
      %s31 = sshll.u32 [#allocation4], 4
      %s32 = int_to_ptr.vmem [resolvable:$true] %s31
      %37 = dma.hbm_to_vmem [thread:$0]  %s1, 1024, %s32, [#allocation5], 128, 128, 8
    $region9: #{tpu_custom_call.1} parent=1 // pred_fallthru
      _
    // Predicated region
    $region10: #{tpu_custom_call.1} parent=1 // pred_check
      _
    $region11: #{tpu_custom_call.1} parent=1 // pred_check_branch
      %39 = sbr.rel (0) target = $region13
    $region12: #{tpu_custom_call.1} parent=1 // pred_region
      %s41 = ssub.s32 512, 512
      %42 = vsyncadd [#allocation5], %s41
      %s43 = sshll.u32 [#allocation6], 4
      %s44 = int_to_ptr.vmem [resolvable:$true] %s43
      %49 = dma.hbm_to_vmem [thread:$0]  %s2, 512, %s44, [#allocation5], 128, 128, 8
    $region13: #{tpu_custom_call.1} parent=1 // pred_fallthru
      _
    // Predicated region
    $region14: #{tpu_custom_call.1} parent=1 // pred_check
      _
    $region15: #{tpu_custom_call.1} parent=1 // pred_check_branch
      %51 = sbr.rel (0) target = $region17
    $region16: #{tpu_custom_call.1} parent=1 // pred_region
      _
    $region17: #{tpu_custom_call.1} parent=1 // pred_fallthru
      _
    // Predicated region
    $region18: #{tpu_custom_call.1} parent=1 // pred_check
      _
    $region19: #{tpu_custom_call.1} parent=1 // pred_check_branch
      %53 = sbr.rel (0) target = $region21
    $region20: #{tpu_custom_call.1} parent=1 // pred_region
      %s55 = ssub.s32 512, 512
      %56 = vsyncadd [#allocation8], %s55
      %s57 = sshll.u32 [#allocation7], 4
      %s58 = int_to_ptr.vmem [resolvable:$true] %s57
      %63 = dma.hbm_to_vmem [thread:$0]  %s4, 512, %s58, [#allocation8], 128, 128, 8
    $region21: #{tpu_custom_call.1} parent=1 // pred_fallthru
      _
    // Predicated region
    $region22: #{tpu_custom_call.1} parent=1 // pred_check
      _
    $region23: #{tpu_custom_call.1} parent=1 // pred_check_branch
      %65 = sbr.rel (0) target = $region25
    $region24: #{tpu_custom_call.1} parent=1 // pred_region
      _
    $region25: #{tpu_custom_call.1} parent=1 // pred_fallthru
      _
    // Predicated region
    $region26: #{tpu_custom_call.1} parent=1 // pred_check
      _
    $region27: #{tpu_custom_call.1} parent=1 // pred_check_branch
      %67 = sbr.rel (0) target = $region29
    $region28: #{tpu_custom_call.1} parent=1 // pred_region
      %68 = dma.done [#allocation3], 256
    $region29: #{tpu_custom_call.1} parent=1 // pred_fallthru
      _
    // Predicated region
    $region30: #{tpu_custom_call.1} parent=1 // pred_check
      _
    $region31: #{tpu_custom_call.1} parent=1 // pred_check_branch
      %70 = sbr.rel (0) target = $region33
    $region32: #{tpu_custom_call.1} parent=1 // pred_region
      %71 = dma.done [#allocation5], 1024
    $region33: #{tpu_custom_call.1} parent=1 // pred_fallthru
      _
    // Predicated region
    $region34: #{tpu_custom_call.1} parent=1 // pred_check
      _
    $region35: #{tpu_custom_call.1} parent=1 // pred_check_branch
      %73 = sbr.rel (0) target = $region37
    $region36: #{tpu_custom_call.1} parent=1 // pred_region
      %74 = dma.done [#allocation5], 512
    $region37: #{tpu_custom_call.1} parent=1 // pred_fallthru
      _
    // Predicated region
    $region38: #{tpu_custom_call.1} parent=1 // pred_check
      _
    $region39: #{tpu_custom_call.1} parent=1 // pred_check_branch
      %76 = sbr.rel (0) target = $region41
    $region40: #{tpu_custom_call.1} parent=1 // pred_region
      %77 = dma.done [#allocation8], 512
    $region41: #{tpu_custom_call.1} parent=1 // pred_fallthru
      _
    %v78 = vld [vmem:[#allocation2] sm:$0xff]
    %v79 = vld [vmem:[#allocation2 + $0x8] sm:$0xff]
    %vm80 = vcmask 261120
    %v81 = vsel %vm80, %v78, 0.0
    %v82 = vrot.slane %v81, 4
    %v83 = vadd.f32 %v81, %v82
    %v84 = vrot.slane %v83, 2
    %v85 = vadd.f32 %v83, %v84
    %v86 = vrot.slane %v85, 1
    %v87 = vadd.f32 %v85, %v86
    %v88 = vsel %vm80, %v79, 0.0
    %v89 = vrot.slane %v88, 4
    %v90 = vadd.f32 %v88, %v89
    %v91 = vrot.slane %v90, 2
    %v92 = vadd.f32 %v90, %v91
    %v93 = vrot.slane %v92, 1
    %v94 = vadd.f32 %v92, %v93
    %v95 = vld [vmem:[#allocation4] sm:$0xff]
    %v96 = vld [vmem:[#allocation4 + $0x8] sm:$0xff]
    %v97 = vld [vmem:[#allocation4 + $0x10] sm:$0xff]
    %v98 = vld [vmem:[#allocation4 + $0x18] sm:$0xff]
    %v99 = vld [vmem:[#allocation4 + $0x20] sm:$0xff]
    %v100 = vld [vmem:[#allocation4 + $0x28] sm:$0xff]
    %v101 = vld [vmem:[#allocation4 + $0x30] sm:$0xff]
    %v102 = vld [vmem:[#allocation4 + $0x38] sm:$0xff]
    %v103 = vsel %vm80, %v95, 0.0
    %v104 = vrot.slane %v103, 4
    %v105 = vadd.f32 %v103, %v104
    %v106 = vrot.slane %v105, 2
    %v107 = vadd.f32 %v105, %v106
    %v108 = vrot.slane %v107, 1
    %v109 = vadd.f32 %v107, %v108
    %v110 = vsel %vm80, %v96, 0.0
    %v111 = vrot.slane %v110, 4
    %v112 = vadd.f32 %v110, %v111
    %v113 = vrot.slane %v112, 2
    %v114 = vadd.f32 %v112, %v113
    %v115 = vrot.slane %v114, 1
    %v116 = vadd.f32 %v114, %v115
    %v117 = vsel %vm80, %v97, 0.0
    %v118 = vrot.slane %v117, 4
    %v119 = vadd.f32 %v117, %v118
    %v120 = vrot.slane %v119, 2
    %v121 = vadd.f32 %v119, %v120
    %v122 = vrot.slane %v121, 1
    %v123 = vadd.f32 %v121, %v122
    %v124 = vsel %vm80, %v98, 0.0
    %v125 = vrot.slane %v124, 4
    %v126 = vadd.f32 %v124, %v125
    %v127 = vrot.slane %v126, 2
    %v128 = vadd.f32 %v126, %v127
    %v129 = vrot.slane %v128, 1
    %v130 = vadd.f32 %v128, %v129
    %v131 = vsel %vm80, %v99, 0.0
    %v132 = vrot.slane %v131, 4
    %v133 = vadd.f32 %v131, %v132
    %v134 = vrot.slane %v133, 2
    %v135 = vadd.f32 %v133, %v134
    %v136 = vrot.slane %v135, 1
    %v137 = vadd.f32 %v135, %v136
    %v138 = vsel %vm80, %v100, 0.0
    %v139 = vrot.slane %v138, 4
    %v140 = vadd.f32 %v138, %v139
    %v141 = vrot.slane %v140, 2
    %v142 = vadd.f32 %v140, %v141
    %v143 = vrot.slane %v142, 1
    %v144 = vadd.f32 %v142, %v143
    %v145 = vsel %vm80, %v101, 0.0
    %v146 = vrot.slane %v145, 4
    %v147 = vadd.f32 %v145, %v146
    %v148 = vrot.slane %v147, 2
    %v149 = vadd.f32 %v147, %v148
    %v150 = vrot.slane %v149, 1
    %v151 = vadd.f32 %v149, %v150
    %v152 = vsel %vm80, %v102, 0.0
    %v153 = vrot.slane %v152, 4
    %v154 = vadd.f32 %v152, %v153
    %v155 = vrot.slane %v154, 2
    %v156 = vadd.f32 %v154, %v155
    %v157 = vrot.slane %v156, 1
    %v158 = vadd.f32 %v156, %v157
    %v159 = vrcp.pop 8.0
    %v160 = vmul.f32 %v109, %v159
    %v161 = vmul.f32 %v116, %v159
    %v162 = vmul.f32 %v123, %v159
    %v163 = vmul.f32 %v130, %v159
    %v164 = vmul.f32 %v137, %v159
    %v165 = vmul.f32 %v144, %v159
    %v166 = vmul.f32 %v151, %v159
    %v167 = vmul.f32 %v158, %v159
    %v168 = vld [vmem:[#allocation6] sm:$0xff]
    %v169 = vld [vmem:[#allocation6 + $0x8] sm:$0xff]
    %v170 = vld [vmem:[#allocation6 + $0x10] sm:$0xff]
    %v171 = vld [vmem:[#allocation6 + $0x18] sm:$0xff]
    %v172 = vld [vmem:[%s3] sm:$0x1]
    %v174 = vlaneseq
    %v175 = vshrl.u32 %v174, 7
    %v176 = vsub.s32 0, %v175
    %v177 = vrot.slane %v172, %v176
    %vm181 = vcmask 1041409
    %v182 = vsel %vm181, %v94, %v87
    %v183 = vsel %vm80, %v182, 0
    %185 = vmatprep.subr.mxu0 0.0
    %186 = vmatpush1.msra.mxu0 %v168
    %187 = vmatprep.subr.mxu0 0.0
    %188 = vmatpush1.msra.mxu0 %v169
    %189 = vmatprep.subr.mxu0 0.0
    %190 = vmatpush1.msra.mxu0 %v170
    %191 = vmatprep.subr.mxu0 0.0
    %192 = vmatpush1.msra.mxu0 %v171
    %193 = vmatprep.subr.mxu0 0.0
    %194 = vmatpush1.msra.mxu0 0.0
    %195 = vmatprep.subr.mxu0 0.0
    %196 = vmatpush1.msra.mxu0 0.0
    %197 = vmatprep.subr.mxu0 0.0
    %198 = vmatpush1.msra.mxu0 0.0
    %199 = vmatprep.subr.mxu0 0.0
    %200 = vmatpush1.msra.mxu0 0.0
    %201 = vmatprep.subr.mxu0 0.0
    %202 = vmatpush1.msra.mxu0 0.0
    %203 = vmatprep.subr.mxu0 0.0
    %204 = vmatpush1.msra.mxu0 0.0
    %205 = vmatprep.subr.mxu0 0.0
    %206 = vmatpush1.msra.mxu0 0.0
    %207 = vmatprep.subr.mxu0 0.0
    %208 = vmatpush1.msra.mxu0 0.0
    %209 = vmatprep.subr.mxu0 0.0
    %210 = vmatpush1.msra.mxu0 0.0
    %211 = vmatprep.subr.mxu0 0.0
    %212 = vmatpush1.msra.mxu0 0.0
    %213 = vmatprep.subr.mxu0 0.0
    %214 = vmatpush1.msra.mxu0 0.0
    %215 = vmatprep.subr.mxu0 0.0
    %216 = vmatpush1.msra.mxu0 0.0
    %217 = vmatprep.subr.mxu0 0.0
    %218 = vmatpush1.msra.mxu0 0.0
    %219 = vmatprep.subr.mxu0 0.0
    %220 = vmatpush1.msra.mxu0 0.0
    %221 = vmatprep.subr.mxu0 0.0
    %222 = vmatpush1.msra.mxu0 0.0
    %223 = vmatprep.subr.mxu0 0.0
    %224 = vmatpush1.msra.mxu0 0.0
    %225 = vmatprep.subr.mxu0 0.0
    %226 = vmatpush1.msra.mxu0 0.0
    %227 = vmatprep.subr.mxu0 0.0
    %228 = vmatpush1.msra.mxu0 0.0
    %229 = vmatprep.subr.mxu0 0.0
    %230 = vmatpush1.msra.mxu0 0.0
    %231 = vmatprep.subr.mxu0 0.0
    %232 = vmatpush1.msra.mxu0 0.0
    %233 = vmatprep.subr.mxu0 0.0
    %234 = vmatpush1.msra.mxu0 0.0
    %235 = vmatprep.subr.mxu0 0.0
    %236 = vmatpush1.msra.mxu0 0.0
    %237 = vmatprep.subr.mxu0 0.0
    %238 = vmatpush1.msra.mxu0 0.0
    %239 = vmatprep.subr.mxu0 0.0
    %240 = vmatpush1.msra.mxu0 0.0
    %241 = vmatprep.subr.mxu0 0.0
    %242 = vmatpush1.msra.mxu0 0.0
    %243 = vmatprep.subr.mxu0 0.0
    %244 = vmatpush1.msra.mxu0 0.0
    %245 = vmatprep.subr.mxu0 0.0
    %246 = vmatpush1.msra.mxu0 0.0
    %247 = vmatprep.subr.mxu0 0.0
    %248 = vmatpush1.msra.mxu0 0.0
    %249 = vmatprep.mubr.f32.mxu0 0.0
    %250 = vmatmul.mubr.f32.gmra.mrb[0].mxu0 %v183
    %v251 = vpop.f32.mrb[0].mxu0
    %v252 = vadd.f32 %v177, %v251
    %v253 = vpop.f32.mrb[0].mxu0
    %254 = vdwg.mxu0
    %v255 = vld [vmem:[#allocation7] sm:$0xff]
    %v256 = vld [vmem:[#allocation7 + $0x8] sm:$0xff]
    %v257 = vld [vmem:[#allocation7 + $0x10] sm:$0xff]
    %v258 = vld [vmem:[#allocation7 + $0x18] sm:$0xff]
    %v259 = vld [vmem:[%s5] sm:$0x1]
    %v261 = vlaneseq
    %v262 = vshrl.u32 %v261, 7
    %v263 = vsub.s32 0, %v262
    %v264 = vrot.slane %v259, %v263
    %v274 = vsel %vm181, %v161, %v160
    %vm275 = vcmask 1042434
    %v276 = vsel %vm275, %v162, %v274
    %vm277 = vcmask 1043459
    %v278 = vsel %vm277, %v163, %v276
    %vm279 = vcmask 1044484
    %v280 = vsel %vm279, %v164, %v278
    %vm281 = vcmask 1045509
    %v282 = vsel %vm281, %v165, %v280
    %vm283 = vcmask 1046534
    %v284 = vsel %vm283, %v166, %v282
    %vm285 = vcmask 1047559
    %v286 = vsel %vm285, %v167, %v284
    %v287 = vsel %vm80, %v286, 0
    %289 = vmatprep.subr.mxu0 0.0
    %290 = vmatpush1.msra.mxu0 %v255
    %291 = vmatprep.subr.mxu0 0.0
    %292 = vmatpush1.msra.mxu0 %v256
    %293 = vmatprep.subr.mxu0 0.0
    %294 = vmatpush1.msra.mxu0 %v257
    %295 = vmatprep.subr.mxu0 0.0
    %296 = vmatpush1.msra.mxu0 %v258
    %297 = vmatprep.subr.mxu0 0.0
    %298 = vmatpush1.msra.mxu0 0.0
    %299 = vmatprep.subr.mxu0 0.0
    %300 = vmatpush1.msra.mxu0 0.0
    %301 = vmatprep.subr.mxu0 0.0
    %302 = vmatpush1.msra.mxu0 0.0
    %303 = vmatprep.subr.mxu0 0.0
    %304 = vmatpush1.msra.mxu0 0.0
    %305 = vmatprep.subr.mxu0 0.0
    %306 = vmatpush1.msra.mxu0 0.0
    %307 = vmatprep.subr.mxu0 0.0
    %308 = vmatpush1.msra.mxu0 0.0
    %309 = vmatprep.subr.mxu0 0.0
    %310 = vmatpush1.msra.mxu0 0.0
    %311 = vmatprep.subr.mxu0 0.0
    %312 = vmatpush1.msra.mxu0 0.0
    %313 = vmatprep.subr.mxu0 0.0
    %314 = vmatpush1.msra.mxu0 0.0
    %315 = vmatprep.subr.mxu0 0.0
    %316 = vmatpush1.msra.mxu0 0.0
    %317 = vmatprep.subr.mxu0 0.0
    %318 = vmatpush1.msra.mxu0 0.0
    %319 = vmatprep.subr.mxu0 0.0
    %320 = vmatpush1.msra.mxu0 0.0
    %321 = vmatprep.subr.mxu0 0.0
    %322 = vmatpush1.msra.mxu0 0.0
    %323 = vmatprep.subr.mxu0 0.0
    %324 = vmatpush1.msra.mxu0 0.0
    %325 = vmatprep.subr.mxu0 0.0
    %326 = vmatpush1.msra.mxu0 0.0
    %327 = vmatprep.subr.mxu0 0.0
    %328 = vmatpush1.msra.mxu0 0.0
    %329 = vmatprep.subr.mxu0 0.0
    %330 = vmatpush1.msra.mxu0 0.0
    %331 = vmatprep.subr.mxu0 0.0
    %332 = vmatpush1.msra.mxu0 0.0
    %333 = vmatprep.subr.mxu0 0.0
    %334 = vmatpush1.msra.mxu0 0.0
    %335 = vmatprep.subr.mxu0 0.0
    %336 = vmatpush1.msra.mxu0 0.0
    %337 = vmatprep.subr.mxu0 0.0
    %338 = vmatpush1.msra.mxu0 0.0
    %339 = vmatprep.subr.mxu0 0.0
    %340 = vmatpush1.msra.mxu0 0.0
    %341 = vmatprep.subr.mxu0 0.0
    %342 = vmatpush1.msra.mxu0 0.0
    %343 = vmatprep.subr.mxu0 0.0
    %344 = vmatpush1.msra.mxu0 0.0
    %345 = vmatprep.subr.mxu0 0.0
    %346 = vmatpush1.msra.mxu0 0.0
    %347 = vmatprep.subr.mxu0 0.0
    %348 = vmatpush1.msra.mxu0 0.0
    %349 = vmatprep.subr.mxu0 0.0
    %350 = vmatpush1.msra.mxu0 0.0
    %351 = vmatprep.subr.mxu0 0.0
    %352 = vmatpush1.msra.mxu0 0.0
    %353 = vmatprep.mubr.f32.mxu0 0.0
    %354 = vmatmul.mubr.f32.gmra.mrb[0].mxu0 %v287
    %v355 = vpop.f32.mrb[0].mxu0
    %v356 = vadd.f32 %v264, %v355
    %v357 = vpop.f32.mrb[0].mxu0
    %358 = vdwg.mxu0
    %v360 = vsel %vm80, %v252, 0
    %v363 = vsel %vm80, %v356, 0
    %365 = vmatprep.subr.mxu0 0.0
    %366 = vmatpush1.xpose.msra.mxu0 %v363
    %367 = vmatprep.subr.mxu0 0.0
    %368 = vmatpush1.xpose.msra.mxu0 0.0
    %369 = vmatprep.subr.mxu0 0.0
    %370 = vmatpush1.xpose.msra.mxu0 0.0
    %371 = vmatprep.subr.mxu0 0.0
    %372 = vmatpush1.xpose.msra.mxu0 0.0
    %373 = vmatprep.subr.mxu0 0.0
    %374 = vmatpush1.xpose.msra.mxu0 0.0
    %375 = vmatprep.subr.mxu0 0.0
    %376 = vmatpush1.xpose.msra.mxu0 0.0
    %377 = vmatprep.subr.mxu0 0.0
    %378 = vmatpush1.xpose.msra.mxu0 0.0
    %379 = vmatprep.subr.mxu0 0.0
    %380 = vmatpush1.xpose.msra.mxu0 0.0
    %381 = vmatprep.subr.mxu0 0.0
    %382 = vmatpush1.xpose.msra.mxu0 0.0
    %383 = vmatprep.subr.mxu0 0.0
    %384 = vmatpush1.xpose.msra.mxu0 0.0
    %385 = vmatprep.subr.mxu0 0.0
    %386 = vmatpush1.xpose.msra.mxu0 0.0
    %387 = vmatprep.subr.mxu0 0.0
    %388 = vmatpush1.xpose.msra.mxu0 0.0
    %389 = vmatprep.subr.mxu0 0.0
    %390 = vmatpush1.xpose.msra.mxu0 0.0
    %391 = vmatprep.subr.mxu0 0.0
    %392 = vmatpush1.xpose.msra.mxu0 0.0
    %393 = vmatprep.subr.mxu0 0.0
    %394 = vmatpush1.xpose.msra.mxu0 0.0
    %395 = vmatprep.subr.mxu0 0.0
    %396 = vmatpush1.xpose.msra.mxu0 0.0
    %397 = vmatprep.subr.mxu0 0.0
    %398 = vmatpush1.xpose.msra.mxu0 0.0
    %399 = vmatprep.subr.mxu0 0.0
    %400 = vmatpush1.xpose.msra.mxu0 0.0
    %401 = vmatprep.subr.mxu0 0.0
    %402 = vmatpush1.xpose.msra.mxu0 0.0
    %403 = vmatprep.subr.mxu0 0.0
    %404 = vmatpush1.xpose.msra.mxu0 0.0
    %405 = vmatprep.subr.mxu0 0.0
    %406 = vmatpush1.xpose.msra.mxu0 0.0
    %407 = vmatprep.subr.mxu0 0.0
    %408 = vmatpush1.xpose.msra.mxu0 0.0
    %409 = vmatprep.subr.mxu0 0.0
    %410 = vmatpush1.xpose.msra.mxu0 0.0
    %411 = vmatprep.subr.mxu0 0.0
    %412 = vmatpush1.xpose.msra.mxu0 0.0
    %413 = vmatprep.subr.mxu0 0.0
    %414 = vmatpush1.xpose.msra.mxu0 0.0
    %415 = vmatprep.subr.mxu0 0.0
    %416 = vmatpush1.xpose.msra.mxu0 0.0
    %417 = vmatprep.subr.mxu0 0.0
    %418 = vmatpush1.xpose.msra.mxu0 0.0
    %419 = vmatprep.subr.mxu0 0.0
    %420 = vmatpush1.xpose.msra.mxu0 0.0
    %421 = vmatprep.subr.mxu0 0.0
    %422 = vmatpush1.xpose.msra.mxu0 0.0
    %423 = vmatprep.subr.mxu0 0.0
    %424 = vmatpush1.xpose.msra.mxu0 0.0
    %425 = vmatprep.subr.mxu0 0.0
    %426 = vmatpush1.xpose.msra.mxu0 0.0
    %427 = vmatprep.subr.mxu0 0.0
    %428 = vmatpush1.xpose.msra.mxu0 0.0
    %429 = vmatprep.mubr.f32.mxu0 0.0
    %430 = vmatmul.mubr.f32.gmra.mrb[0].mxu0 %v360
    %v431 = vpop.f32.mrb[0].mxu0
    %v432 = vadd.f32 0.0, %v431
    %v433 = vpop.f32.mrb[0].mxu0
    %434 = vdwg.mxu0
    %v435 = vlaneseq
    %v436 = vshrl.u32 %v435, 7
    %v437 = vlaneseq
    %v438 = vand.u32 %v437, 127
    %v439 = vmul.u32 %v436, 4
    %vm440 = vcmp.ge.s32.totalorder %v438, %v439
    %v441 = vadd.s32 %v436, 1
    %v442 = vmul.u32 %v441, 4
    %vm443 = vcmp.lt.s32.totalorder %v438, %v442
    %vm444 = vmand %vm440, %vm443
    %v445 = vsel %vm444, %v432, -inf
    %vm446 = vcmask 58368
    %v447 = vsel %vm446, %v445, -inf
    %448 = vmax.xlane.f32.xlu0 %v447
    %v449 = vpop.xlane.xlu0 %448
    %vm450 = vcmp.eq.f32.partialorder %v445, %v449
    %vm451 = vmand %vm444, %vm450
    %v452 = vsub.s32 %v438, %v439
    %v453 = vsel %vm451, %v452, 4
    %v454 = vsel %vm446, %v453, 2147483647
    %v455 = vand.u32 %v454, 65535
    %v456 = vshra.s32 %v454, 16
    %v457 = vcvt.s32.f32 %v455
    %v458 = vcvt.s32.f32 %v456
    %459 = vmin.xlane.f32.xlu0 %v458
    %v460 = vpop.xlane.xlu0 %459
    %vm461 = vcmp.eq.f32.partialorder %v458, %v460
    %v462 = vsel %vm461, %v457, inf
    %463 = vmin.xlane.f32.xlu0 %v462
    %v464 = vpop.xlane.xlu0 %463
    %v465 = vcvt.f32.s32 %v464
    %v466 = vcvt.f32.s32 %v460
    %v467 = vshll.u32 %v466, 16
    %v468 = vadd.s32 %v467, %v465
    %vm469 = vcmask 1024
    %470 = vst.msk [vmem:[%s6] sm:$0x3] %vm469, %v468
    // Predicated region
    $region42: #{tpu_custom_call.1} parent=1 // pred_check
      _
    $region43: #{tpu_custom_call.1} parent=1 // pred_check_branch
      %472 = sbr.rel (0) target = $region45
    $region44: #{tpu_custom_call.1} parent=1 // pred_region
      _
    $region45: #{tpu_custom_call.1} parent=1 // pred_fallthru
      _
    // Predicated region
    $region46: #{tpu_custom_call.1} parent=1 // pred_check
      _
    $region47: #{tpu_custom_call.1} parent=1 // pred_check_branch
      %474 = sbr.rel (0) target = $region49
    $region48: #{tpu_custom_call.1} parent=1 // pred_region
      _
    $region49: #{tpu_custom_call.1} parent=1 // pred_fallthru
      _
    %475 = vsyncpa [#allocation3], 1
    %476 = vsyncpa [#allocation5], 1
    %477 = vsyncpa [#allocation8], 1

</llo_original>
